<compile_context>
chip_gen: v5e
topology: v5e:2x2
jax: 0.10.0
libtpu: 0.0.40
codegen_flags: <defaults>
</compile_context>

<pallas_src>
import functools

import numpy as np
import jax
import jax.numpy as jnp
from jax.experimental import pallas as pl
from jax.experimental.pallas import tpu as pltpu

N_QUBITS = 4
DIM = 2 ** N_QUBITS          # 16
IN_FEATURES = 4 * 9 * 9      # 324
N_CLASSES = 3


def _round_up(n, m):
    return ((n + m - 1) // m) * m


# ---------------------------------------------------------------------------
# Pallas kernel: the entire forward hot path for one batch tile.
# ---------------------------------------------------------------------------
def hybrid_kernel(x_ref, w1_ref, b1_ref, selc_ref, sels_ref, gcat_ref,
                  tile3_ref, sumsel_ref, b2_ref, out_ref):
    f32 = jnp.float32

    x = x_ref[...]                                                     # (TB, 324)

    # pre_quantum: Linear(324 -> 4)
    q = jnp.dot(x, w1_ref[...], preferred_element_type=f32) + b1_ref[...]   # (TB, 4)

    # dropout(0.5): identity (eval mode)

    # --- AngleEmbedding magnitudes: mag[b,s] = prod_i (cos(q_i/2) if bit_i(s)==0
    #                                                  else sin(q_i/2)) -------------
    half = 0.5 * q
    c = jnp.cos(half)                                                  # (TB, 4)
    s = jnp.sin(half)                                                  # (TB, 4)

    # per-qubit factor broadcast over the 16-state basis via tiny selection matmuls
    # (selc_ref[i]/sels_ref[i] are (4,16) constants); no single-lane slices/broadcasts.
    mag = (jnp.dot(c, selc_ref[0], preferred_element_type=f32)
           + jnp.dot(s, sels_ref[0], preferred_element_type=f32))      # (TB, 16)
    for i in range(1, N_QUBITS):
        fac = (jnp.dot(c, selc_ref[i], preferred_element_type=f32)
               + jnp.dot(s, sels_ref[i], preferred_element_type=f32))
        mag = mag * fac

    # --- folded quantum circuit + PauliZ expvals + post_quantum Linear -----------
    # logits_j = mag G_j mag^T + b2_j, with G_j precomputed on the host.
    p = jnp.dot(mag, gcat_ref[...], preferred_element_type=f32)        # (TB, 48)
    magrep = jnp.dot(mag, tile3_ref[...], preferred_element_type=f32)  # (TB, 48)
    logits = (jnp.dot(p * magrep, sumsel_ref[...],
                      preferred_element_type=f32) + b2_ref[...])       # (TB, 3)

    # log_softmax over dim=1
    mx = jnp.max(logits, axis=1, keepdims=True)
    lse = mx + jnp.log(jnp.sum(jnp.exp(logits - mx), axis=1, keepdims=True))
    out_ref[...] = logits - lse


# ---------------------------------------------------------------------------
# Host-side constant construction (plain numpy glue).
# ---------------------------------------------------------------------------
def _bit(s, wire):
    # PennyLane convention: wire 0 is the most-significant bit of the state index.
    return (s >> (N_QUBITS - 1 - wire)) & 1


def _rx(theta):
    c, sn = np.cos(theta / 2.0), np.sin(theta / 2.0)
    return np.array([[c, -1j * sn], [-1j * sn, c]], dtype=np.complex128)


def _single_qubit_full(op, wire):
    mats = [np.eye(2, dtype=np.complex128)] * N_QUBITS
    mats[wire] = op
    full = mats[0]
    for m in mats[1:]:
        full = np.kron(full, m)
    return full


def _cnot_full(control, target):
    M = np.zeros((DIM, DIM), dtype=np.complex128)
    for s_ in range(DIM):
        bits = [_bit(s_, i) for i in range(N_QUBITS)]
        nb = list(bits)
        if bits[control] == 1:
            nb[target] ^= 1
        t = sum(b << (N_QUBITS - 1 - i) for i, b in enumerate(nb))
        M[t, s_] = 1.0
    return M


def build_entangler_unitary(weights):
    """BasicEntanglerLayers(weights (L,4)): per layer RX on each wire then CNOT ring."""
    U = np.eye(DIM, dtype=np.complex128)
    for l in range(weights.shape[0]):
        layer = np.eye(DIM, dtype=np.complex128)
        for i in range(N_QUBITS):
            layer = _single_qubit_full(_rx(weights[l, i]), i) @ layer
        for i in range(N_QUBITS):
            layer = _cnot_full(i, (i + 1) % N_QUBITS) @ layer
        U = layer @ U
    return U


def build_fold_constants(q_weights, w2_t):
    """Fold entangler unitary + embedding phases + PauliZ + post_quantum weight.

    w2_t: (4, 3) post_quantum weight stored (in, out).
    Returns selc (4,4,16), sels (4,4,16), gcat (16,48), tile3 (16,48), sumsel (48,3).
    """
    U = build_entangler_unitary(np.asarray(q_weights, dtype=np.float64))
    ph = np.array([(-1j) ** bin(s_).count("1") for s_ in range(DIM)],
                  dtype=np.complex128)
    UD = U @ np.diag(ph)

    bits = np.zeros((N_QUBITS, DIM), dtype=np.float64)
    for i in range(N_QUBITS):
        for s_ in range(DIM):
            bits[i, s_] = _bit(s_, i)

    w2_t = np.asarray(w2_t, dtype=np.float64)
    n_out = w2_t.shape[1]
    g_list = []
    for j in range(n_out):
        Gj = np.zeros((DIM, DIM), dtype=np.complex128)
        for i in range(N_QUBITS):
            Zi = np.diag(1.0 - 2.0 * bits[i])
            Gj += w2_t[i, j] * (UD.conj().T @ Zi @ UD)
        g_list.append(np.real(Gj))
    gcat = np.concatenate(g_list, axis=1).astype(np.float32)            # (16, 48)

    # per-qubit selection matrices: (c @ selc[i] + s @ sels[i])[b, s] =
    #   cos(q_i/2) if bit_i(s)==0 else sin(q_i/2)
    selc = np.zeros((N_QUBITS, N_QUBITS, DIM), dtype=np.float32)
    sels = np.zeros((N_QUBITS, N_QUBITS, DIM), dtype=np.float32)
    for i in range(N_QUBITS):
        for s_ in range(DIM):
            selc[i, i, s_] = 1.0 - bits[i, s_]
            sels[i, i, s_] = bits[i, s_]

    tile3 = np.concatenate([np.eye(DIM, dtype=np.float32)] * n_out, axis=1)  # (16, 48)
    sumsel = np.zeros((DIM * n_out, n_out), dtype=np.float32)                # (48, 3)
    for j in range(n_out):
        sumsel[DIM * j:DIM * (j + 1), j] = 1.0
    return selc, sels, gcat, tile3, sumsel


# ---------------------------------------------------------------------------
# Wrapper: flatten, pad batch, launch batch-tiled pallas_call.
# ---------------------------------------------------------------------------
@functools.partial(jax.jit, static_argnames=("block_rows",))
def hybrid_forward(x_nchw, w1, b1, selc, sels, gcat, tile3, sumsel, b2,
                   block_rows=1024):
    B = x_nchw.shape[0]
    x_flat = x_nchw.reshape(B, -1).astype(jnp.float32)                 # (B, 324)

    # batch tile: multiple of 8 rows, large enough to hit the HBM roofline but
    # well inside scoped VMEM on v5e (16 MiB) / v7x (32 MiB): 1024*324*4*2 ~ 2.7 MB.
    tb = max(8, _round_up(min(block_rows, _round_up(B, 8)), 8))
    b_pad = _round_up(B, tb)
    if b_pad != B:
        x_flat = jnp.pad(x_flat, ((0, b_pad - B), (0, 0)))
    grid = (b_pad // tb,)

    consts = (w1, b1, selc, sels, gcat, tile3, sumsel, b2)
    const_bytes = sum(int(np.prod(a.shape)) * 4 for a in consts)
    cost = pl.CostEstimate(
        flops=int(2 * b_pad * (IN_FEATURES * 4 + 8 * 4 * DIM
                               + 2 * DIM * DIM * N_CLASSES
                               + DIM * N_CLASSES)),
        transcendentals=int(12 * b_pad),
        bytes_accessed=int(b_pad * (IN_FEATURES + N_CLASSES) * 4 + const_bytes),
    )

    in_specs = [
        pl.BlockSpec((tb, IN_FEATURES), lambda i: (i, 0)),     # x: batch-tiled stream
        pl.BlockSpec(w1.shape, lambda i: (0, 0)),              # constants: resident
        pl.BlockSpec(b1.shape, lambda i: (0, 0)),
        pl.BlockSpec(selc.shape, lambda i: (0, 0, 0)),
        pl.BlockSpec(sels.shape, lambda i: (0, 0, 0)),
        pl.BlockSpec(gcat.shape, lambda i: (0, 0)),
        pl.BlockSpec(tile3.shape, lambda i: (0, 0)),
        pl.BlockSpec(sumsel.shape, lambda i: (0, 0)),
        pl.BlockSpec(b2.shape, lambda i: (0, 0)),
    ]

    out = pl.pallas_call(
        hybrid_kernel,
        out_shape=jax.ShapeDtypeStruct((b_pad, N_CLASSES), jnp.float32),
        grid=grid,
        in_specs=in_specs,
        out_specs=pl.BlockSpec((tb, N_CLASSES), lambda i: (i, 0)),
        compiler_params=pltpu.CompilerParams(
            dimension_semantics=("parallel",)),
        cost_estimate=cost,
    )(x_flat, *consts)
    return out[:B]


# ---------------------------------------------------------------------------
# Pure numpy reference (full quantum simulation; sanity check only).
# ---------------------------------------------------------------------------
def reference_forward(x_nchw, w1, b1, q_weights, w2, b2):
    x = np.asarray(x_nchw, dtype=np.float64).reshape(x_nchw.shape[0], -1)
    q = x @ np.asarray(w1, np.float64) + np.asarray(b1, np.float64)      # (B, 4)
    U = build_entangler_unitary(np.asarray(q_weights, np.float64))
    outs = []
    for b in range(q.shape[0]):
        psi = np.array([1.0 + 0j])
        for i in range(N_QUBITS):
            single = np.array([np.cos(q[b, i] / 2.0), -1j * np.sin(q[b, i] / 2.0)])
            psi = np.kron(psi, single)
        psi = U @ psi
        probs = np.abs(psi) ** 2
        z = [sum(probs[s_] * (1 - 2 * _bit(s_, i)) for s_ in range(DIM))
             for i in range(N_QUBITS)]
        outs.append(z)
    z = np.array(outs, dtype=np.float64)                                 # (B, 4)
    logits = z @ np.asarray(w2, np.float64) + np.asarray(b2, np.float64)
    mx = logits.max(axis=1, keepdims=True)
    lse = mx + np.log(np.exp(logits - mx).sum(axis=1, keepdims=True))
    return (logits - lse).astype(np.float32)


if __name__ == "__main__":
    key = jax.random.PRNGKey(0)
    k_x, k_w1, k_b1, k_q, k_w2, k_b2, k_x2 = jax.random.split(key, 7)

    # pre_quantum: Linear(324, 4)  (stored already-transposed: (in, out))
    w1 = jax.random.normal(k_w1, (IN_FEATURES, 4), dtype=jnp.float32) * 0.05
    b1 = jax.random.normal(k_b1, (1, 4), dtype=jnp.float32) * 0.05
    # quantum layer weights: (3, 4)
    q_weights = jax.random.normal(k_q, (3, N_QUBITS), dtype=jnp.float32)
    # post_quantum: Linear(4, 3)  (stored (in, out))
    w2 = jax.random.normal(k_w2, (4, 3), dtype=jnp.float32) * 0.5
    b2 = jax.random.normal(k_b2, (1, 3), dtype=jnp.float32) * 0.5

    selc, sels, gcat, tile3, sumsel = build_fold_constants(
        np.asarray(q_weights), np.asarray(w2))
    selc, sels = jnp.asarray(selc), jnp.asarray(sels)
    gcat, tile3, sumsel = jnp.asarray(gcat), jnp.asarray(tile3), jnp.asarray(sumsel)

    # --- small primary check (B=2) -----------------------------------------
    B = 2
    x = jax.random.normal(k_x, (B, 4, 9, 9), dtype=jnp.float32)
    out = hybrid_forward(x, w1, b1, selc, sels, gcat, tile3, sumsel, b2)
    out = jax.block_until_ready(out)
    ref = reference_forward(np.asarray(x), np.asarray(w1), np.asarray(b1),
                            np.asarray(q_weights), np.asarray(w2), np.asarray(b2))
    np.testing.assert_allclose(np.asarray(out), ref, rtol=1e-3, atol=1e-4)

    # --- exercise the multi-tile grid + batch padding path ------------------
    B2 = 40
    x2 = jax.random.normal(k_x2, (B2, 4, 9, 9), dtype=jnp.float32)
    out2 = hybrid_forward(x2, w1, b1, selc, sels, gcat, tile3, sumsel, b2,
                          block_rows=16)
    out2 = jax.block_until_ready(out2)
    ref2 = reference_forward(np.asarray(x2), np.asarray(w1), np.asarray(b1),
                             np.asarray(q_weights), np.asarray(w2), np.asarray(b2))
    np.testing.assert_allclose(np.asarray(out2), ref2, rtol=1e-3, atol=1e-4)

    print("KERNEL_OK")
</pallas_src>

<mosaic_0001>
module attributes {stable_mosaic.version = 11 : i64} {
  func.func @hybrid_kernel(%arg0: i32, %arg1: memref<8x324xf32, #tpu.memory_space<vmem>>, %arg2: memref<324x4xf32, #tpu.memory_space<vmem>>, %arg3: memref<1x4xf32, #tpu.memory_space<vmem>>, %arg4: memref<4x4x16xf32, #tpu.memory_space<vmem>>, %arg5: memref<4x4x16xf32, #tpu.memory_space<vmem>>, %arg6: memref<16x48xf32, #tpu.memory_space<vmem>>, %arg7: memref<16x48xf32, #tpu.memory_space<vmem>>, %arg8: memref<48x3xf32, #tpu.memory_space<vmem>>, %arg9: memref<1x3xf32, #tpu.memory_space<vmem>>, %arg10: memref<8x3xf32, #tpu.memory_space<vmem>>) attributes {dimension_semantics = [#tpu.dimension_semantics<parallel>], iteration_bounds = array<i64: 1>, scalar_prefetch = 0 : i64, scratch_operands = 0 : i64, tpu.core_type = #tpu.core_type<tc>, window_params = [{transform_indices = @transform_0, window_bounds = array<i64: 8, 324>}, {pipeline_mode = #tpu.pipeline_mode<synchronous>, transform_indices = @transform_1, window_bounds = array<i64: 324, 4>}, {pipeline_mode = #tpu.pipeline_mode<synchronous>, transform_indices = @transform_2, window_bounds = array<i64: 1, 4>}, {pipeline_mode = #tpu.pipeline_mode<synchronous>, transform_indices = @transform_3, window_bounds = array<i64: 4, 4, 16>}, {pipeline_mode = #tpu.pipeline_mode<synchronous>, transform_indices = @transform_4, window_bounds = array<i64: 4, 4, 16>}, {pipeline_mode = #tpu.pipeline_mode<synchronous>, transform_indices = @transform_5, window_bounds = array<i64: 16, 48>}, {pipeline_mode = #tpu.pipeline_mode<synchronous>, transform_indices = @transform_6, window_bounds = array<i64: 16, 48>}, {pipeline_mode = #tpu.pipeline_mode<synchronous>, transform_indices = @transform_7, window_bounds = array<i64: 48, 3>}, {pipeline_mode = #tpu.pipeline_mode<synchronous>, transform_indices = @transform_8, window_bounds = array<i64: 1, 3>}, {transform_indices = @transform_9, window_bounds = array<i64: 8, 3>}]} {
    %c0 = arith.constant 0 : index
    %c0_0 = arith.constant 0 : index
    %0 = vector.load %arg1[%c0, %c0_0] : memref<8x324xf32, #tpu.memory_space<vmem>>, vector<8x324xf32>
    %c0_1 = arith.constant 0 : index
    %c0_2 = arith.constant 0 : index
    %1 = vector.load %arg2[%c0_1, %c0_2] : memref<324x4xf32, #tpu.memory_space<vmem>>, vector<324x4xf32>
    %cst = arith.constant dense<0.000000e+00> : vector<8x4xf32>
    %2 = tpu.matmul %0, %1, %cst {dimension_numbers = #tpu.dot_dimension_numbers<[1], [0], [0], [1], [0, 0, 1, 1], [], []>} : vector<8x324xf32>, vector<324x4xf32>, vector<8x4xf32> -> vector<8x4xf32>
    %c0_3 = arith.constant 0 : index
    %c0_4 = arith.constant 0 : index
    %3 = vector.load %arg3[%c0_3, %c0_4] : memref<1x4xf32, #tpu.memory_space<vmem>>, vector<1x4xf32>
    %4 = vector.broadcast %3 : vector<1x4xf32> to vector<8x4xf32>
    %5 = arith.addf %2, %4 : vector<8x4xf32>
    %cst_5 = arith.constant 5.000000e-01 : f32
    %6 = vector.broadcast %cst_5 : f32 to vector<8x4xf32>
    %7 = arith.mulf %6, %5 : vector<8x4xf32>
    %8 = math.cos %7 : vector<8x4xf32>
    %9 = math.sin %7 : vector<8x4xf32>
    %c0_6 = arith.constant 0 : index
    %c0_7 = arith.constant 0 : index
    %c0_8 = arith.constant 0 : index
    %10 = vector.load %arg4[%c0_6, %c0_7, %c0_8] : memref<4x4x16xf32, #tpu.memory_space<vmem>>, vector<1x4x16xf32>
    %11 = vector.shape_cast %10 : vector<1x4x16xf32> to vector<4x16xf32>
    %cst_9 = arith.constant dense<0.000000e+00> : vector<8x16xf32>
    %12 = tpu.matmul %8, %11, %cst_9 {dimension_numbers = #tpu.dot_dimension_numbers<[1], [0], [0], [1], [0, 0, 1, 1], [], []>} : vector<8x4xf32>, vector<4x16xf32>, vector<8x16xf32> -> vector<8x16xf32>
    %c0_10 = arith.constant 0 : index
    %c0_11 = arith.constant 0 : index
    %c0_12 = arith.constant 0 : index
    %13 = vector.load %arg5[%c0_10, %c0_11, %c0_12] : memref<4x4x16xf32, #tpu.memory_space<vmem>>, vector<1x4x16xf32>
    %14 = vector.shape_cast %13 : vector<1x4x16xf32> to vector<4x16xf32>
    %cst_13 = arith.constant dense<0.000000e+00> : vector<8x16xf32>
    %15 = tpu.matmul %9, %14, %cst_13 {dimension_numbers = #tpu.dot_dimension_numbers<[1], [0], [0], [1], [0, 0, 1, 1], [], []>} : vector<8x4xf32>, vector<4x16xf32>, vector<8x16xf32> -> vector<8x16xf32>
    %16 = arith.addf %12, %15 : vector<8x16xf32>
    %c1 = arith.constant 1 : index
    %c0_14 = arith.constant 0 : index
    %c0_15 = arith.constant 0 : index
    %17 = vector.load %arg4[%c1, %c0_14, %c0_15] : memref<4x4x16xf32, #tpu.memory_space<vmem>>, vector<1x4x16xf32>
    %18 = vector.shape_cast %17 : vector<1x4x16xf32> to vector<4x16xf32>
    %cst_16 = arith.constant dense<0.000000e+00> : vector<8x16xf32>
    %19 = tpu.matmul %8, %18, %cst_16 {dimension_numbers = #tpu.dot_dimension_numbers<[1], [0], [0], [1], [0, 0, 1, 1], [], []>} : vector<8x4xf32>, vector<4x16xf32>, vector<8x16xf32> -> vector<8x16xf32>
    %c1_17 = arith.constant 1 : index
    %c0_18 = arith.constant 0 : index
    %c0_19 = arith.constant 0 : index
    %20 = vector.load %arg5[%c1_17, %c0_18, %c0_19] : memref<4x4x16xf32, #tpu.memory_space<vmem>>, vector<1x4x16xf32>
    %21 = vector.shape_cast %20 : vector<1x4x16xf32> to vector<4x16xf32>
    %cst_20 = arith.constant dense<0.000000e+00> : vector<8x16xf32>
    %22 = tpu.matmul %9, %21, %cst_20 {dimension_numbers = #tpu.dot_dimension_numbers<[1], [0], [0], [1], [0, 0, 1, 1], [], []>} : vector<8x4xf32>, vector<4x16xf32>, vector<8x16xf32> -> vector<8x16xf32>
    %23 = arith.addf %19, %22 : vector<8x16xf32>
    %24 = arith.mulf %16, %23 : vector<8x16xf32>
    %c2 = arith.constant 2 : index
    %c0_21 = arith.constant 0 : index
    %c0_22 = arith.constant 0 : index
    %25 = vector.load %arg4[%c2, %c0_21, %c0_22] : memref<4x4x16xf32, #tpu.memory_space<vmem>>, vector<1x4x16xf32>
    %26 = vector.shape_cast %25 : vector<1x4x16xf32> to vector<4x16xf32>
    %cst_23 = arith.constant dense<0.000000e+00> : vector<8x16xf32>
    %27 = tpu.matmul %8, %26, %cst_23 {dimension_numbers = #tpu.dot_dimension_numbers<[1], [0], [0], [1], [0, 0, 1, 1], [], []>} : vector<8x4xf32>, vector<4x16xf32>, vector<8x16xf32> -> vector<8x16xf32>
    %c2_24 = arith.constant 2 : index
    %c0_25 = arith.constant 0 : index
    %c0_26 = arith.constant 0 : index
    %28 = vector.load %arg5[%c2_24, %c0_25, %c0_26] : memref<4x4x16xf32, #tpu.memory_space<vmem>>, vector<1x4x16xf32>
    %29 = vector.shape_cast %28 : vector<1x4x16xf32> to vector<4x16xf32>
    %cst_27 = arith.constant dense<0.000000e+00> : vector<8x16xf32>
    %30 = tpu.matmul %9, %29, %cst_27 {dimension_numbers = #tpu.dot_dimension_numbers<[1], [0], [0], [1], [0, 0, 1, 1], [], []>} : vector<8x4xf32>, vector<4x16xf32>, vector<8x16xf32> -> vector<8x16xf32>
    %31 = arith.addf %27, %30 : vector<8x16xf32>
    %32 = arith.mulf %24, %31 : vector<8x16xf32>
    %c3 = arith.constant 3 : index
    %c0_28 = arith.constant 0 : index
    %c0_29 = arith.constant 0 : index
    %33 = vector.load %arg4[%c3, %c0_28, %c0_29] : memref<4x4x16xf32, #tpu.memory_space<vmem>>, vector<1x4x16xf32>
    %34 = vector.shape_cast %33 : vector<1x4x16xf32> to vector<4x16xf32>
    %cst_30 = arith.constant dense<0.000000e+00> : vector<8x16xf32>
    %35 = tpu.matmul %8, %34, %cst_30 {dimension_numbers = #tpu.dot_dimension_numbers<[1], [0], [0], [1], [0, 0, 1, 1], [], []>} : vector<8x4xf32>, vector<4x16xf32>, vector<8x16xf32> -> vector<8x16xf32>
    %c3_31 = arith.constant 3 : index
    %c0_32 = arith.constant 0 : index
    %c0_33 = arith.constant 0 : index
    %36 = vector.load %arg5[%c3_31, %c0_32, %c0_33] : memref<4x4x16xf32, #tpu.memory_space<vmem>>, vector<1x4x16xf32>
    %37 = vector.shape_cast %36 : vector<1x4x16xf32> to vector<4x16xf32>
    %cst_34 = arith.constant dense<0.000000e+00> : vector<8x16xf32>
    %38 = tpu.matmul %9, %37, %cst_34 {dimension_numbers = #tpu.dot_dimension_numbers<[1], [0], [0], [1], [0, 0, 1, 1], [], []>} : vector<8x4xf32>, vector<4x16xf32>, vector<8x16xf32> -> vector<8x16xf32>
    %39 = arith.addf %35, %38 : vector<8x16xf32>
    %40 = arith.mulf %32, %39 : vector<8x16xf32>
    %c0_35 = arith.constant 0 : index
    %c0_36 = arith.constant 0 : index
    %41 = vector.load %arg6[%c0_35, %c0_36] : memref<16x48xf32, #tpu.memory_space<vmem>>, vector<16x48xf32>
    %cst_37 = arith.constant dense<0.000000e+00> : vector<8x48xf32>
    %42 = tpu.matmul %40, %41, %cst_37 {dimension_numbers = #tpu.dot_dimension_numbers<[1], [0], [0], [1], [0, 0, 1, 1], [], []>} : vector<8x16xf32>, vector<16x48xf32>, vector<8x48xf32> -> vector<8x48xf32>
    %c0_38 = arith.constant 0 : index
    %c0_39 = arith.constant 0 : index
    %43 = vector.load %arg7[%c0_38, %c0_39] : memref<16x48xf32, #tpu.memory_space<vmem>>, vector<16x48xf32>
    %cst_40 = arith.constant dense<0.000000e+00> : vector<8x48xf32>
    %44 = tpu.matmul %40, %43, %cst_40 {dimension_numbers = #tpu.dot_dimension_numbers<[1], [0], [0], [1], [0, 0, 1, 1], [], []>} : vector<8x16xf32>, vector<16x48xf32>, vector<8x48xf32> -> vector<8x48xf32>
    %45 = arith.mulf %42, %44 : vector<8x48xf32>
    %c0_41 = arith.constant 0 : index
    %c0_42 = arith.constant 0 : index
    %46 = vector.load %arg8[%c0_41, %c0_42] : memref<48x3xf32, #tpu.memory_space<vmem>>, vector<48x3xf32>
    %cst_43 = arith.constant dense<0.000000e+00> : vector<8x3xf32>
    %47 = tpu.matmul %45, %46, %cst_43 {dimension_numbers = #tpu.dot_dimension_numbers<[1], [0], [0], [1], [0, 0, 1, 1], [], []>} : vector<8x48xf32>, vector<48x3xf32>, vector<8x3xf32> -> vector<8x3xf32>
    %c0_44 = arith.constant 0 : index
    %c0_45 = arith.constant 0 : index
    %48 = vector.load %arg9[%c0_44, %c0_45] : memref<1x3xf32, #tpu.memory_space<vmem>>, vector<1x3xf32>
    %49 = vector.broadcast %48 : vector<1x3xf32> to vector<8x3xf32>
    %50 = arith.addf %47, %49 : vector<8x3xf32>
    %cst_46 = arith.constant dense<0xFF800000> : vector<8xf32>
    %51 = vector.multi_reduction <maximumf>, %50, %cst_46 [1] : vector<8x3xf32> to vector<8xf32>
    %52 = vector.shape_cast %51 : vector<8xf32> to vector<8x1xf32>
    %53 = vector.broadcast %52 : vector<8x1xf32> to vector<8x3xf32>
    %54 = arith.subf %50, %53 : vector<8x3xf32>
    %55 = math.exp %54 : vector<8x3xf32>
    %cst_47 = arith.constant dense<0.000000e+00> : vector<8xf32>
    %56 = vector.multi_reduction <add>, %55, %cst_47 [1] : vector<8x3xf32> to vector<8xf32>
    %57 = vector.shape_cast %56 : vector<8xf32> to vector<8x1xf32>
    %58 = math.log %57 : vector<8x1xf32>
    %59 = arith.addf %52, %58 : vector<8x1xf32>
    %60 = vector.broadcast %59 : vector<8x1xf32> to vector<8x3xf32>
    %61 = arith.subf %50, %60 : vector<8x3xf32>
    %c0_48 = arith.constant 0 : index
    %c0_49 = arith.constant 0 : index
    %62 = vector.load %arg10[%c0_48, %c0_49] : memref<8x3xf32, #tpu.memory_space<vmem>>, vector<8x3xf32>
    tpu.vector_store %arg10[%c0_48, %c0_49], %61 {strides = array<i32>} : memref<8x3xf32, #tpu.memory_space<vmem>>, vector<8x3xf32>,
    return
  }
  func.func @transform_0(%arg0: i32) -> (i32, i32) {
    %c0_i32 = arith.constant 0 : i32
    %c0_i32_0 = arith.constant 0 : i32
    return %arg0, %c0_i32 : i32, i32
  }
  func.func @transform_1(%arg0: i32) -> (i32, i32) {
    %c0_i32 = arith.constant 0 : i32
    %c0_i32_0 = arith.constant 0 : i32
    %c0_i32_1 = arith.constant 0 : i32
    return %c0_i32, %c0_i32_0 : i32, i32
  }
  func.func @transform_2(%arg0: i32) -> (i32, i32) {
    %c0_i32 = arith.constant 0 : i32
    %c0_i32_0 = arith.constant 0 : i32
    %c0_i32_1 = arith.constant 0 : i32
    return %c0_i32, %c0_i32_0 : i32, i32
  }
  func.func @transform_3(%arg0: i32) -> (i32, i32, i32) {
    %c0_i32 = arith.constant 0 : i32
    %c0_i32_0 = arith.constant 0 : i32
    %c0_i32_1 = arith.constant 0 : i32
    %c0_i32_2 = arith.constant 0 : i32
    return %c0_i32, %c0_i32_0, %c0_i32_1 : i32, i32, i32
  }
  func.func @transform_4(%arg0: i32) -> (i32, i32, i32) {
    %c0_i32 = arith.constant 0 : i32
    %c0_i32_0 = arith.constant 0 : i32
    %c0_i32_1 = arith.constant 0 : i32
    %c0_i32_2 = arith.constant 0 : i32
    return %c0_i32, %c0_i32_0, %c0_i32_1 : i32, i32, i32
  }
  func.func @transform_5(%arg0: i32) -> (i32, i32) {
    %c0_i32 = arith.constant 0 : i32
    %c0_i32_0 = arith.constant 0 : i32
    %c0_i32_1 = arith.constant 0 : i32
    return %c0_i32, %c0_i32_0 : i32, i32
  }
  func.func @transform_6(%arg0: i32) -> (i32, i32) {
    %c0_i32 = arith.constant 0 : i32
    %c0_i32_0 = arith.constant 0 : i32
    %c0_i32_1 = arith.constant 0 : i32
    return %c0_i32, %c0_i32_0 : i32, i32
  }
  func.func @transform_7(%arg0: i32) -> (i32, i32) {
    %c0_i32 = arith.constant 0 : i32
    %c0_i32_0 = arith.constant 0 : i32
    %c0_i32_1 = arith.constant 0 : i32
    return %c0_i32, %c0_i32_0 : i32, i32
  }
  func.func @transform_8(%arg0: i32) -> (i32, i32) {
    %c0_i32 = arith.constant 0 : i32
    %c0_i32_0 = arith.constant 0 : i32
    %c0_i32_1 = arith.constant 0 : i32
    return %c0_i32, %c0_i32_0 : i32, i32
  }
  func.func @transform_9(%arg0: i32) -> (i32, i32) {
    %c0_i32 = arith.constant 0 : i32
    %c0_i32_0 = arith.constant 0 : i32
    return %arg0, %c0_i32 : i32, i32
  }
}

</mosaic_0001>

<llo_original>
// kernel: hybrid_forward.1
$region0: #{hybrid_forward.1}
  #allocation0 [shape = 'u32[]', space=smem, size = 0x4, offset = 0x4, fixed_abs, tag = 'smem constant byte address 0x4 - core index']
  #allocation1 [shape = 'u32[72,128]{1,0:T(1,128)}', space=vmem, size = 0x9000, scoped, tag = 'internal scratch']
  %s0 = inlined_call_operand.vmem [shape: f32[8,324], index: 0, kind: input, shape index: {}]
  %s1 = inlined_call_operand.vmem [shape: f32[324,4], index: 1, kind: input, shape index: {}]
  %s2 = inlined_call_operand.vmem [shape: f32[1,4], index: 2, kind: input, shape index: {}]
  %s3 = inlined_call_operand.vmem [shape: f32[4,4,16], index: 3, kind: input, shape index: {}]
  %s4 = inlined_call_operand.vmem [shape: f32[4,4,16], index: 4, kind: input, shape index: {}]
  %s5 = inlined_call_operand.vmem [shape: f32[16,48], index: 5, kind: input, shape index: {}]
  %s6 = inlined_call_operand.vmem [shape: f32[16,48], index: 6, kind: input, shape index: {}]
  %s7 = inlined_call_operand.vmem [shape: f32[48,3], index: 7, kind: input, shape index: {}]
  %s8 = inlined_call_operand.vmem [shape: f32[1,3], index: 8, kind: input, shape index: {}]
  %s9 = inlined_call_operand.vmem [shape: f32[8,3], index: 9, kind: output, shape index: {}]
  %s10 = sld [smem:[#allocation0]]
  $region46: #{hybrid_forward.1} parent=0
    _
  %s12 = ssub.s32 1, %s10
  %s13 = scalar_select 0, %s12, %s10
  // Predicated region
  $region2: #{hybrid_forward.1} parent=0 // pred_check
    _
  $region3: #{hybrid_forward.1} parent=0 // pred_check_branch
    %15 = sbr.rel (0) target = $region5
  $region4: #{hybrid_forward.1} parent=0 // pred_region
    _
  $region5: #{hybrid_forward.1} parent=0 // pred_fallthru
    _
  // Predicated region
  $region6: #{hybrid_forward.1} parent=0 // pred_check
    _
  $region7: #{hybrid_forward.1} parent=0 // pred_check_branch
    %17 = sbr.rel (0) target = $region9
  $region8: #{hybrid_forward.1} parent=0 // pred_region
    _
  $region9: #{hybrid_forward.1} parent=0 // pred_fallthru
    _
  // Predicated region
  $region10: #{hybrid_forward.1} parent=0 // pred_check
    _
  $region11: #{hybrid_forward.1} parent=0 // pred_check_branch
    %19 = sbr.rel (0) target = $region13
  $region12: #{hybrid_forward.1} parent=0 // pred_region
    _
  $region13: #{hybrid_forward.1} parent=0 // pred_fallthru
    _
  // Predicated region
  $region14: #{hybrid_forward.1} parent=0 // pred_check
    _
  $region15: #{hybrid_forward.1} parent=0 // pred_check_branch
    %21 = sbr.rel (0) target = $region17
  $region16: #{hybrid_forward.1} parent=0 // pred_region
    _
  $region17: #{hybrid_forward.1} parent=0 // pred_fallthru
    _
  // Predicated region
  $region18: #{hybrid_forward.1} parent=0 // pred_check
    _
  $region19: #{hybrid_forward.1} parent=0 // pred_check_branch
    %23 = sbr.rel (0) target = $region21
  $region20: #{hybrid_forward.1} parent=0 // pred_region
    _
  $region21: #{hybrid_forward.1} parent=0 // pred_fallthru
    _
  // Predicated region
  $region22: #{hybrid_forward.1} parent=0 // pred_check
    _
  $region23: #{hybrid_forward.1} parent=0 // pred_check_branch
    %25 = sbr.rel (0) target = $region25
  $region24: #{hybrid_forward.1} parent=0 // pred_region
    _
  $region25: #{hybrid_forward.1} parent=0 // pred_fallthru
    _
  // Predicated region
  $region26: #{hybrid_forward.1} parent=0 // pred_check
    _
  $region27: #{hybrid_forward.1} parent=0 // pred_check_branch
    %27 = sbr.rel (0) target = $region29
  $region28: #{hybrid_forward.1} parent=0 // pred_region
    _
  $region29: #{hybrid_forward.1} parent=0 // pred_fallthru
    _
  // Predicated region
  $region30: #{hybrid_forward.1} parent=0 // pred_check
    _
  $region31: #{hybrid_forward.1} parent=0 // pred_check_branch
    %29 = sbr.rel (0) target = $region33
  $region32: #{hybrid_forward.1} parent=0 // pred_region
    _
  $region33: #{hybrid_forward.1} parent=0 // pred_fallthru
    _
  // Predicated region
  $region34: #{hybrid_forward.1} parent=0 // pred_check
    _
  $region35: #{hybrid_forward.1} parent=0 // pred_check_branch
    %31 = sbr.rel (0) target = $region37
  $region36: #{hybrid_forward.1} parent=0 // pred_region
    _
  $region37: #{hybrid_forward.1} parent=0 // pred_fallthru
    _
  %v32 = vld [vmem:[%s0] sm:$0xff]
  %v33 = vld [vmem:[%s0 + $0x8] sm:$0xff]
  %v34 = vld [vmem:[%s0 + $0x10] sm:$0xff]
  %v35 = vld [vmem:[%s1] sm:$0xff]
  %v36 = vld [vmem:[%s1 + $0x8] sm:$0xff]
  %v37 = vld [vmem:[%s1 + $0x10] sm:$0xff]
  %v38 = vld [vmem:[%s1 + $0x18] sm:$0xff]
  %v39 = vld [vmem:[%s1 + $0x20] sm:$0xff]
  %v40 = vld [vmem:[%s1 + $0x28] sm:$0xff]
  %v41 = vld [vmem:[%s1 + $0x30] sm:$0xff]
  %v42 = vld [vmem:[%s1 + $0x38] sm:$0xff]
  %v43 = vld [vmem:[%s1 + $0x40] sm:$0xff]
  %v44 = vld [vmem:[%s1 + $0x48] sm:$0xff]
  %v45 = vld [vmem:[%s1 + $0x50] sm:$0xff]
  %v46 = vld [vmem:[%s1 + $0x58] sm:$0xff]
  %v47 = vld [vmem:[%s1 + $0x60] sm:$0xff]
  %v48 = vld [vmem:[%s1 + $0x68] sm:$0xff]
  %v49 = vld [vmem:[%s1 + $0x70] sm:$0xff]
  %v50 = vld [vmem:[%s1 + $0x78] sm:$0xff]
  %v51 = vld [vmem:[%s1 + $0x80] sm:$0xff]
  %v52 = vld [vmem:[%s1 + $0x88] sm:$0xff]
  %v53 = vld [vmem:[%s1 + $0x90] sm:$0xff]
  %v54 = vld [vmem:[%s1 + $0x98] sm:$0xff]
  %v55 = vld [vmem:[%s1 + $0xa0] sm:$0xff]
  %v56 = vld [vmem:[%s1 + $0xa8] sm:$0xff]
  %v57 = vld [vmem:[%s1 + $0xb0] sm:$0xff]
  %v58 = vld [vmem:[%s1 + $0xb8] sm:$0xff]
  %v59 = vld [vmem:[%s1 + $0xc0] sm:$0xff]
  %v60 = vld [vmem:[%s1 + $0xc8] sm:$0xff]
  %v61 = vld [vmem:[%s1 + $0xd0] sm:$0xff]
  %v62 = vld [vmem:[%s1 + $0xd8] sm:$0xff]
  %v63 = vld [vmem:[%s1 + $0xe0] sm:$0xff]
  %v64 = vld [vmem:[%s1 + $0xe8] sm:$0xff]
  %v65 = vld [vmem:[%s1 + $0xf0] sm:$0xff]
  %v66 = vld [vmem:[%s1 + $0xf8] sm:$0xff]
  %v67 = vld [vmem:[%s1 + $0x100] sm:$0xff]
  %v68 = vld [vmem:[%s1 + $0x108] sm:$0xff]
  %v69 = vld [vmem:[%s1 + $0x110] sm:$0xff]
  %v70 = vld [vmem:[%s1 + $0x118] sm:$0xff]
  %v71 = vld [vmem:[%s1 + $0x120] sm:$0xff]
  %v72 = vld [vmem:[%s1 + $0x128] sm:$0xff]
  %v73 = vld [vmem:[%s1 + $0x130] sm:$0xff]
  %v74 = vld [vmem:[%s1 + $0x138] sm:$0xff]
  %v75 = vld [vmem:[%s1 + $0x140] sm:$0xf]
  %v76 = vld [vmem:[%s2] sm:$0x1]
  %v78 = vperm.slane %v76, 0
  %vm80 = vcmask 556032
  %v82 = vsel %vm80, %v34, 0
  %vm84 = vcmask 1043456
  %v86 = vsel %vm84, %v75, 0
  %88 = vmatpush.msra.mxu0 %v50
  %89 = vmatpush.msra.mxu0 %v49
  %90 = vmatpush.msra.mxu0 %v48
  %91 = vmatpush.msra.mxu0 %v47
  %92 = vmatpush.msra.mxu0 %v46
  %93 = vmatpush.msra.mxu0 %v45
  %94 = vmatpush.msra.mxu0 %v44
  %95 = vmatpush.msra.mxu0 %v43
  %96 = vmatpush.msra.mxu0 %v42
  %97 = vmatpush.msra.mxu0 %v41
  %98 = vmatpush.msra.mxu0 %v40
  %99 = vmatpush.msra.mxu0 %v39
  %100 = vmatpush.msra.mxu0 %v38
  %101 = vmatpush.msra.mxu0 %v37
  %102 = vmatpush.msra.mxu0 %v36
  %103 = vmatpush.msra.mxu0 %v35
  %104 = vmatmul.f32.gmra.mxu0 %v32
  %v105 = vpop.f32.mrf.mxu0
  %v106 = vadd.f32 %v78, %v105
  %107 = vdwg.mxu0
  %108 = vmatpush.msra.mxu0 %v66
  %109 = vmatpush.msra.mxu0 %v65
  %110 = vmatpush.msra.mxu0 %v64
  %111 = vmatpush.msra.mxu0 %v63
  %112 = vmatpush.msra.mxu0 %v62
  %113 = vmatpush.msra.mxu0 %v61
  %114 = vmatpush.msra.mxu0 %v60
  %115 = vmatpush.msra.mxu0 %v59
  %116 = vmatpush.msra.mxu0 %v58
  %117 = vmatpush.msra.mxu0 %v57
  %118 = vmatpush.msra.mxu0 %v56
  %119 = vmatpush.msra.mxu0 %v55
  %120 = vmatpush.msra.mxu0 %v54
  %121 = vmatpush.msra.mxu0 %v53
  %122 = vmatpush.msra.mxu0 %v52
  %123 = vmatpush.msra.mxu0 %v51
  %124 = vmatmul.f32.gmra.mxu0 %v33
  %v125 = vpop.f32.mrf.mxu0
  %v126 = vadd.f32 %v106, %v125
  %127 = vdwg.mxu0
  %128 = vmatpush.msra.mxu0 0.0
  %129 = vmatpush.msra.mxu0 0.0
  %130 = vmatpush.msra.mxu0 0.0
  %131 = vmatpush.msra.mxu0 0.0
  %132 = vmatpush.msra.mxu0 0.0
  %133 = vmatpush.msra.mxu0 0.0
  %134 = vmatpush.msra.mxu0 0.0
  %135 = vmatpush.msra.mxu0 %v86
  %136 = vmatpush.msra.mxu0 %v74
  %137 = vmatpush.msra.mxu0 %v73
  %138 = vmatpush.msra.mxu0 %v72
  %139 = vmatpush.msra.mxu0 %v71
  %140 = vmatpush.msra.mxu0 %v70
  %141 = vmatpush.msra.mxu0 %v69
  %142 = vmatpush.msra.mxu0 %v68
  %143 = vmatpush.msra.mxu0 %v67
  %144 = vmatmul.f32.gmra.mxu0 %v82
  %v145 = vpop.f32.mrf.mxu0
  %v146 = vadd.f32 %v126, %v145
  %147 = vdwg.mxu0
  %v148 = vmul.f32 %v146, 0.5
  %v149 = vand.u32 2147483647, %v148
  %vm150 = vcmp.le.f32.partialorder %v149, 0.7853982
  %vm151 = vcmp.lt.s32.totalorder %v148, 0
  %v152 = vand.u32 %v148, 2139095040
  %v153 = vshrl.u32 %v152, 23
  %v154 = vsub.s32 %v153, 127
  %v155 = vand.u32 2147483647, %v148
  %v156 = vand.u32 %v155, 8388607
  %v157 = vor.u32 %v156, 8388608
  %v158 = vsub.s32 0, %v157
  %v159 = vadd.s32 %v154, 1
  %vm160 = vcmp.gt.s32.totalorder %v159, 0
  %v161 = vsel %vm160, %v159, 0
  %v162 = vshrl.u32 %v161, 5
  %v163 = vand.u32 %v161, 31
  %v164 = vsub.s32 32, %v163
  %v165 = vshrl.u32 683565275, %v164
  %v166 = vshll.u32 683565275, %v163
  %v167 = vshrl.u32 2475754826, %v164
  %v168 = vor.u32 %v166, %v167
  %v169 = vshll.u32 2475754826, %v163
  %v170 = vshrl.u32 2131351028, %v164
  %v171 = vor.u32 %v169, %v170
  %v172 = vshll.u32 2131351028, %v163
  %v173 = vshrl.u32 2102212464, %v164
  %v174 = vor.u32 %v172, %v173
  %v175 = vshll.u32 2102212464, %v163
  %v176 = vshrl.u32 920167782, %v164
  %v177 = vor.u32 %v175, %v176
  %v178 = vshll.u32 920167782, %v163
  %v179 = vshrl.u32 1326507024, %v164
  %v180 = vor.u32 %v178, %v179
  %vm181 = vcmp.lt.s32.totalorder %v162, 1
  %vm182 = vcmp.lt.s32.totalorder %v162, 2
  %vm183 = vcmp.lt.s32.totalorder %v162, 3
  %vm184 = vcmp.lt.s32.totalorder %v162, 4
  %v185 = vsel %vm181, %v165, %v168
  %v186 = vsel %vm184, %v174, 2102212464
  %v187 = vsel %vm183, %v171, %v186
  %v188 = vsel %vm182, %v185, %v187
  %v189 = vsel %vm181, %v168, %v171
  %v190 = vsel %vm184, %v177, 920167782
  %v191 = vsel %vm183, %v174, %v190
  %v192 = vsel %vm182, %v189, %v191
  %v193 = vsel %vm181, %v171, %v174
  %v194 = vsel %vm184, %v180, 1326507024
  %v195 = vsel %vm183, %v177, %v194
  %v196 = vsel %vm182, %v193, %v195
  %v197 = vshll.u32 %v157, 8
  %v198 = vand.u32 %v197, 65535
  %v199 = vshrl.u32 %v197, 16
  %v200 = vand.u32 %v196, 65535
  %v201 = vshrl.u32 %v196, 16
  %v202 = vmul.u32 %v198, %v200
  %v203 = vmul.u32 %v198, %v201
  %v204 = vmul.u32 %v199, %v200
  %v205 = vmul.u32 %v199, %v201
  %v206 = vshll.u32 %v203, 16
  %v207 = vshrl.u32 %v203, 16
  %v208 = vshll.u32 %v204, 16
  %v209 = vshrl.u32 %v204, 16
  %vm210 = vc.u32 %v202, %v206
  %v211 = vsel %vm210, 1, 0
  %v212 = vadd.s32 %v202, %v206
  %v213 = vadd.s32 %v205, %v211
  %vm214 = vc.u32 %v212, %v208
  %v215 = vsel %vm214, 1, 0
  %v216 = vadd.s32 %v212, %v208
  %v217 = vadd.s32 %v213, %v215
  %v218 = vadd.s32 %v217, %v207
  %v219 = vadd.s32 %v218, %v209
  %v220 = vand.u32 %v197, 65535
  %v221 = vshrl.u32 %v197, 16
  %v222 = vand.u32 %v192, 65535
  %v223 = vshrl.u32 %v192, 16
  %v224 = vmul.u32 %v220, %v222
  %v225 = vmul.u32 %v220, %v223
  %v226 = vmul.u32 %v221, %v222
  %v227 = vmul.u32 %v221, %v223
  %v228 = vshll.u32 %v225, 16
  %v229 = vshrl.u32 %v225, 16
  %v230 = vshll.u32 %v226, 16
  %v231 = vshrl.u32 %v226, 16
  %vm232 = vc.u32 %v224, %v228
  %v233 = vsel %vm232, 1, 0
  %v234 = vadd.s32 %v224, %v228
  %v235 = vadd.s32 %v227, %v233
  %vm236 = vc.u32 %v234, %v230
  %v237 = vsel %vm236, 1, 0
  %v238 = vadd.s32 %v234, %v230
  %v239 = vadd.s32 %v235, %v237
  %v240 = vadd.s32 %v239, %v229
  %v241 = vadd.s32 %v240, %v231
  %v242 = vmul.u32 %v197, %v188
  %v243 = vadd.s32 %v219, %v238
  %vm244 = vc.u32 %v219, %v238
  %v245 = vadd.s32 %v241, 1
  %v246 = vsel %vm244, %v245, %v241
  %v247 = vadd.s32 %v242, %v246
  %v248 = vadd.s32 %v247, 536870912
  %v249 = vshrl.u32 %v248, 30
  %v250 = vshll.u32 %v249, 30
  %v251 = vsub.s32 %v247, %v250
  %vm252 = vcmp.lt.s32.totalorder %v251, 0
  %v253 = vsub.s32 0, %v251
  %v254 = vsel %vm252, %v253, %v251
  %v255 = vclz %v254
  %v256 = vsub.s32 %v255, 2
  %vm257 = vcmp.gt.s32.totalorder 0, %v256
  %v258 = vsel %vm257, 0, %v256
  %v259 = vsub.s32 32, %v258
  %v260 = vshll.u32 %v251, %v258
  %v261 = vshrl.u32 %v243, %v259
  %v262 = vor.u32 %v260, %v261
  %v263 = vsub.s32 4294967266, %v258
  %v264 = vadd.s32 %v263, 127
  %v265 = vshll.u32 %v264, 23
  %v266 = vor.u32 4788187, %v265
  %v267 = vand.u32 2147483647, %v266
  %v269 = vcvt.s32.f32 %v262
  %v270 = vmul.f32 %v269, %v267
  %v271 = vxor.u32 %v270, 2147483648
  %v272 = vsel %vm151, %v271, %v270
  %v273 = vsub.s32 4, %v249
  %v274 = vsel %vm151, %v273, %v249
  %v275 = vsel %vm150, %v148, %v272
  %v276 = vsel %vm150, 0, %v274
  %v277 = vmul.f32 %v275, %v275
  %v278 = vmul.f32 %v277, -0.001358992
  %v279 = vadd.f32 %v278, 0.041655596
  %v280 = vmul.f32 %v277, %v279
  %v281 = vadd.f32 %v280, -0.4999988
  %v282 = vmul.f32 %v277, %v281
  %v283 = vadd.f32 1.0, %v282
  %v284 = vmul.f32 %v275, %v275
  %v285 = vmul.f32 %v284, -0.00019511016
  %v286 = vadd.f32 %v285, 0.008332121
  %v287 = vmul.f32 %v284, %v286
  %v288 = vadd.f32 %v287, -0.16666654
  %v289 = vmul.f32 %v284, %v288
  %v290 = vadd.f32 %v289, 1.0
  %v291 = vmul.f32 %v290, %v275
  %vm292 = vweird.f32 %v148
  %v293 = vand.u32 %v276, 3
  %vm294 = vcmp.lt.s32.totalorder %v293, 2
  %vm295 = vcmp.eq.s32.totalorder %v293, 0
  %v296 = vxor.u32 %v291, 2147483648
  %v297 = vsel %vm295, %v283, %v296
  %vm298 = vcmp.eq.s32.totalorder %v293, 2
  %v299 = vxor.u32 %v283, 2147483648
  %v300 = vsel %vm298, %v299, %v291
  %v301 = vsel %vm294, %v297, %v300
  %v302 = vsel %vm292, nan, %v301
  %v303 = vand.u32 2147483647, %v148
  %vm304 = vcmp.le.f32.partialorder %v303, 0.7853982
  %vm305 = vcmp.lt.s32.totalorder %v148, 0
  %v306 = vand.u32 %v148, 2139095040
  %v307 = vshrl.u32 %v306, 23
  %v308 = vsub.s32 %v307, 127
  %v309 = vand.u32 2147483647, %v148
  %v310 = vand.u32 %v309, 8388607
  %v311 = vor.u32 %v310, 8388608
  %v312 = vsub.s32 0, %v311
  %v313 = vadd.s32 %v308, 1
  %vm314 = vcmp.gt.s32.totalorder %v313, 0
  %v315 = vsel %vm314, %v313, 0
  %v316 = vshrl.u32 %v315, 5
  %v317 = vand.u32 %v315, 31
  %v318 = vsub.s32 32, %v317
  %v319 = vshrl.u32 683565275, %v318
  %v320 = vshll.u32 683565275, %v317
  %v321 = vshrl.u32 2475754826, %v318
  %v322 = vor.u32 %v320, %v321
  %v323 = vshll.u32 2475754826, %v317
  %v324 = vshrl.u32 2131351028, %v318
  %v325 = vor.u32 %v323, %v324
  %v326 = vshll.u32 2131351028, %v317
  %v327 = vshrl.u32 2102212464, %v318
  %v328 = vor.u32 %v326, %v327
  %v329 = vshll.u32 2102212464, %v317
  %v330 = vshrl.u32 920167782, %v318
  %v331 = vor.u32 %v329, %v330
  %v332 = vshll.u32 920167782, %v317
  %v333 = vshrl.u32 1326507024, %v318
  %v334 = vor.u32 %v332, %v333
  %vm335 = vcmp.lt.s32.totalorder %v316, 1
  %vm336 = vcmp.lt.s32.totalorder %v316, 2
  %vm337 = vcmp.lt.s32.totalorder %v316, 3
  %vm338 = vcmp.lt.s32.totalorder %v316, 4
  %v339 = vsel %vm335, %v319, %v322
  %v340 = vsel %vm338, %v328, 2102212464
  %v341 = vsel %vm337, %v325, %v340
  %v342 = vsel %vm336, %v339, %v341
  %v343 = vsel %vm335, %v322, %v325
  %v344 = vsel %vm338, %v331, 920167782
  %v345 = vsel %vm337, %v328, %v344
  %v346 = vsel %vm336, %v343, %v345
  %v347 = vsel %vm335, %v325, %v328
  %v348 = vsel %vm338, %v334, 1326507024
  %v349 = vsel %vm337, %v331, %v348
  %v350 = vsel %vm336, %v347, %v349
  %v351 = vshll.u32 %v311, 8
  %v352 = vand.u32 %v351, 65535
  %v353 = vshrl.u32 %v351, 16
  %v354 = vand.u32 %v350, 65535
  %v355 = vshrl.u32 %v350, 16
  %v356 = vmul.u32 %v352, %v354
  %v357 = vmul.u32 %v352, %v355
  %v358 = vmul.u32 %v353, %v354
  %v359 = vmul.u32 %v353, %v355
  %v360 = vshll.u32 %v357, 16
  %v361 = vshrl.u32 %v357, 16
  %v362 = vshll.u32 %v358, 16
  %v363 = vshrl.u32 %v358, 16
  %vm364 = vc.u32 %v356, %v360
  %v365 = vsel %vm364, 1, 0
  %v366 = vadd.s32 %v356, %v360
  %v367 = vadd.s32 %v359, %v365
  %vm368 = vc.u32 %v366, %v362
  %v369 = vsel %vm368, 1, 0
  %v370 = vadd.s32 %v366, %v362
  %v371 = vadd.s32 %v367, %v369
  %v372 = vadd.s32 %v371, %v361
  %v373 = vadd.s32 %v372, %v363
  %v374 = vand.u32 %v351, 65535
  %v375 = vshrl.u32 %v351, 16
  %v376 = vand.u32 %v346, 65535
  %v377 = vshrl.u32 %v346, 16
  %v378 = vmul.u32 %v374, %v376
  %v379 = vmul.u32 %v374, %v377
  %v380 = vmul.u32 %v375, %v376
  %v381 = vmul.u32 %v375, %v377
  %v382 = vshll.u32 %v379, 16
  %v383 = vshrl.u32 %v379, 16
  %v384 = vshll.u32 %v380, 16
  %v385 = vshrl.u32 %v380, 16
  %vm386 = vc.u32 %v378, %v382
  %v387 = vsel %vm386, 1, 0
  %v388 = vadd.s32 %v378, %v382
  %v389 = vadd.s32 %v381, %v387
  %vm390 = vc.u32 %v388, %v384
  %v391 = vsel %vm390, 1, 0
  %v392 = vadd.s32 %v388, %v384
  %v393 = vadd.s32 %v389, %v391
  %v394 = vadd.s32 %v393, %v383
  %v395 = vadd.s32 %v394, %v385
  %v396 = vmul.u32 %v351, %v342
  %v397 = vadd.s32 %v373, %v392
  %vm398 = vc.u32 %v373, %v392
  %v399 = vadd.s32 %v395, 1
  %v400 = vsel %vm398, %v399, %v395
  %v401 = vadd.s32 %v396, %v400
  %v402 = vadd.s32 %v401, 536870912
  %v403 = vshrl.u32 %v402, 30
  %v404 = vshll.u32 %v403, 30
  %v405 = vsub.s32 %v401, %v404
  %vm406 = vcmp.lt.s32.totalorder %v405, 0
  %v407 = vsub.s32 0, %v405
  %v408 = vsel %vm406, %v407, %v405
  %v409 = vclz %v408
  %v410 = vsub.s32 %v409, 2
  %vm411 = vcmp.gt.s32.totalorder 0, %v410
  %v412 = vsel %vm411, 0, %v410
  %v413 = vsub.s32 32, %v412
  %v414 = vshll.u32 %v405, %v412
  %v415 = vshrl.u32 %v397, %v413
  %v416 = vor.u32 %v414, %v415
  %v417 = vsub.s32 4294967266, %v412
  %v418 = vadd.s32 %v417, 127
  %v419 = vshll.u32 %v418, 23
  %v420 = vor.u32 4788187, %v419
  %v421 = vand.u32 2147483647, %v420
  %v423 = vcvt.s32.f32 %v416
  %v424 = vmul.f32 %v423, %v421
  %v425 = vxor.u32 %v424, 2147483648
  %v426 = vsel %vm305, %v425, %v424
  %v427 = vsub.s32 4, %v403
  %v428 = vsel %vm305, %v427, %v403
  %v429 = vsel %vm304, %v148, %v426
  %v430 = vsel %vm304, 0, %v428
  %v431 = vmul.f32 %v429, %v429
  %v432 = vmul.f32 %v431, -0.001358992
  %v433 = vadd.f32 %v432, 0.041655596
  %v434 = vmul.f32 %v431, %v433
  %v435 = vadd.f32 %v434, -0.4999988
  %v436 = vmul.f32 %v431, %v435
  %v437 = vadd.f32 1.0, %v436
  %v438 = vmul.f32 %v429, %v429
  %v439 = vmul.f32 %v438, -0.00019511016
  %v440 = vadd.f32 %v439, 0.008332121
  %v441 = vmul.f32 %v438, %v440
  %v442 = vadd.f32 %v441, -0.16666654
  %v443 = vmul.f32 %v438, %v442
  %v444 = vadd.f32 %v443, 1.0
  %v445 = vmul.f32 %v444, %v429
  %vm446 = vweird.f32 %v148
  %v447 = vadd.s32 %v430, 3
  %v448 = vand.u32 %v447, 3
  %vm449 = vcmp.lt.s32.totalorder %v448, 2
  %vm450 = vcmp.eq.s32.totalorder %v448, 0
  %v451 = vxor.u32 %v445, 2147483648
  %v452 = vsel %vm450, %v437, %v451
  %vm453 = vcmp.eq.s32.totalorder %v448, 2
  %v454 = vxor.u32 %v437, 2147483648
  %v455 = vsel %vm453, %v454, %v445
  %v456 = vsel %vm449, %v452, %v455
  %v457 = vsel %vm446, nan, %v456
  %v458 = vld [vmem:[%s3] sm:$0xf]
  %v459 = vld [vmem:[%s4] sm:$0xf]
  %vm460 = vcmask 31744
  %v462 = vsel %vm460, %v457, 0
  %v465 = vsel %vm84, %v459, 0
  %467 = vmatpush.msra.mxu0 0.0
  %468 = vmatpush.msra.mxu0 0.0
  %469 = vmatpush.msra.mxu0 0.0
  %470 = vmatpush.msra.mxu0 0.0
  %471 = vmatpush.msra.mxu0 0.0
  %472 = vmatpush.msra.mxu0 0.0
  %473 = vmatpush.msra.mxu0 0.0
  %474 = vmatpush.msra.mxu0 0.0
  %475 = vmatpush.msra.mxu0 0.0
  %476 = vmatpush.msra.mxu0 0.0
  %477 = vmatpush.msra.mxu0 0.0
  %478 = vmatpush.msra.mxu0 0.0
  %479 = vmatpush.msra.mxu0 0.0
  %480 = vmatpush.msra.mxu0 0.0
  %481 = vmatpush.msra.mxu0 0.0
  %482 = vmatpush.msra.mxu0 %v465
  %483 = vmatmul.f32.gmra.mxu0 %v462
  %v484 = vpop.f32.mrf.mxu0
  %v485 = vadd.f32 0.0, %v484
  %486 = vdwg.mxu0
  %v488 = vsel %vm460, %v302, 0
  %v491 = vsel %vm84, %v458, 0
  %493 = vmatpush.msra.mxu0 0.0
  %494 = vmatpush.msra.mxu0 0.0
  %495 = vmatpush.msra.mxu0 0.0
  %496 = vmatpush.msra.mxu0 0.0
  %497 = vmatpush.msra.mxu0 0.0
  %498 = vmatpush.msra.mxu0 0.0
  %499 = vmatpush.msra.mxu0 0.0
  %500 = vmatpush.msra.mxu0 0.0
  %501 = vmatpush.msra.mxu0 0.0
  %502 = vmatpush.msra.mxu0 0.0
  %503 = vmatpush.msra.mxu0 0.0
  %504 = vmatpush.msra.mxu0 0.0
  %505 = vmatpush.msra.mxu0 0.0
  %506 = vmatpush.msra.mxu0 0.0
  %507 = vmatpush.msra.mxu0 0.0
  %508 = vmatpush.msra.mxu0 %v491
  %509 = vmatmul.f32.gmra.mxu0 %v488
  %v510 = vpop.f32.mrf.mxu0
  %v511 = vadd.f32 %v485, %v510
  %512 = vdwg.mxu0
  %s513 = scalar_lea.vmem %s3, 4
  %v514 = vld [vmem:[%s513] sm:$0xf]
  %s515 = scalar_lea.vmem %s4, 4
  %v516 = vld [vmem:[%s515] sm:$0xf]
  %v518 = vsel %vm84, %v516, 0
  %520 = vmatpush.msra.mxu0 0.0
  %521 = vmatpush.msra.mxu0 0.0
  %522 = vmatpush.msra.mxu0 0.0
  %523 = vmatpush.msra.mxu0 0.0
  %524 = vmatpush.msra.mxu0 0.0
  %525 = vmatpush.msra.mxu0 0.0
  %526 = vmatpush.msra.mxu0 0.0
  %527 = vmatpush.msra.mxu0 0.0
  %528 = vmatpush.msra.mxu0 0.0
  %529 = vmatpush.msra.mxu0 0.0
  %530 = vmatpush.msra.mxu0 0.0
  %531 = vmatpush.msra.mxu0 0.0
  %532 = vmatpush.msra.mxu0 0.0
  %533 = vmatpush.msra.mxu0 0.0
  %534 = vmatpush.msra.mxu0 0.0
  %535 = vmatpush.msra.mxu0 %v518
  %536 = vmatmul.f32.gmra.mxu0 %v462
  %v537 = vpop.f32.mrf.mxu0
  %v538 = vadd.f32 0.0, %v537
  %539 = vdwg.mxu0
  %v541 = vsel %vm84, %v514, 0
  %543 = vmatpush.msra.mxu0 0.0
  %544 = vmatpush.msra.mxu0 0.0
  %545 = vmatpush.msra.mxu0 0.0
  %546 = vmatpush.msra.mxu0 0.0
  %547 = vmatpush.msra.mxu0 0.0
  %548 = vmatpush.msra.mxu0 0.0
  %549 = vmatpush.msra.mxu0 0.0
  %550 = vmatpush.msra.mxu0 0.0
  %551 = vmatpush.msra.mxu0 0.0
  %552 = vmatpush.msra.mxu0 0.0
  %553 = vmatpush.msra.mxu0 0.0
  %554 = vmatpush.msra.mxu0 0.0
  %555 = vmatpush.msra.mxu0 0.0
  %556 = vmatpush.msra.mxu0 0.0
  %557 = vmatpush.msra.mxu0 0.0
  %558 = vmatpush.msra.mxu0 %v541
  %559 = vmatmul.f32.gmra.mxu0 %v488
  %v560 = vpop.f32.mrf.mxu0
  %v561 = vadd.f32 %v538, %v560
  %562 = vdwg.mxu0
  %v563 = vmul.f32 %v511, %v561
  %s564 = scalar_lea.vmem %s3, 8
  %v565 = vld [vmem:[%s564] sm:$0xf]
  %s566 = scalar_lea.vmem %s4, 8
  %v567 = vld [vmem:[%s566] sm:$0xf]
  %v569 = vsel %vm84, %v567, 0
  %571 = vmatpush.msra.mxu0 0.0
  %572 = vmatpush.msra.mxu0 0.0
  %573 = vmatpush.msra.mxu0 0.0
  %574 = vmatpush.msra.mxu0 0.0
  %575 = vmatpush.msra.mxu0 0.0
  %576 = vmatpush.msra.mxu0 0.0
  %577 = vmatpush.msra.mxu0 0.0
  %578 = vmatpush.msra.mxu0 0.0
  %579 = vmatpush.msra.mxu0 0.0
  %580 = vmatpush.msra.mxu0 0.0
  %581 = vmatpush.msra.mxu0 0.0
  %582 = vmatpush.msra.mxu0 0.0
  %583 = vmatpush.msra.mxu0 0.0
  %584 = vmatpush.msra.mxu0 0.0
  %585 = vmatpush.msra.mxu0 0.0
  %586 = vmatpush.msra.mxu0 %v569
  %587 = vmatmul.f32.gmra.mxu0 %v462
  %v588 = vpop.f32.mrf.mxu0
  %v589 = vadd.f32 0.0, %v588
  %590 = vdwg.mxu0
  %v592 = vsel %vm84, %v565, 0
  %594 = vmatpush.msra.mxu0 0.0
  %595 = vmatpush.msra.mxu0 0.0
  %596 = vmatpush.msra.mxu0 0.0
  %597 = vmatpush.msra.mxu0 0.0
  %598 = vmatpush.msra.mxu0 0.0
  %599 = vmatpush.msra.mxu0 0.0
  %600 = vmatpush.msra.mxu0 0.0
  %601 = vmatpush.msra.mxu0 0.0
  %602 = vmatpush.msra.mxu0 0.0
  %603 = vmatpush.msra.mxu0 0.0
  %604 = vmatpush.msra.mxu0 0.0
  %605 = vmatpush.msra.mxu0 0.0
  %606 = vmatpush.msra.mxu0 0.0
  %607 = vmatpush.msra.mxu0 0.0
  %608 = vmatpush.msra.mxu0 0.0
  %609 = vmatpush.msra.mxu0 %v592
  %610 = vmatmul.f32.gmra.mxu0 %v488
  %v611 = vpop.f32.mrf.mxu0
  %v612 = vadd.f32 %v589, %v611
  %613 = vdwg.mxu0
  %v614 = vmul.f32 %v563, %v612
  %s615 = scalar_lea.vmem %s3, 12
  %v616 = vld [vmem:[%s615] sm:$0xf]
  %s617 = scalar_lea.vmem %s4, 12
  %v618 = vld [vmem:[%s617] sm:$0xf]
  %v620 = vsel %vm84, %v618, 0
  %622 = vmatpush.msra.mxu0 0.0
  %623 = vmatpush.msra.mxu0 0.0
  %624 = vmatpush.msra.mxu0 0.0
  %625 = vmatpush.msra.mxu0 0.0
  %626 = vmatpush.msra.mxu0 0.0
  %627 = vmatpush.msra.mxu0 0.0
  %628 = vmatpush.msra.mxu0 0.0
  %629 = vmatpush.msra.mxu0 0.0
  %630 = vmatpush.msra.mxu0 0.0
  %631 = vmatpush.msra.mxu0 0.0
  %632 = vmatpush.msra.mxu0 0.0
  %633 = vmatpush.msra.mxu0 0.0
  %634 = vmatpush.msra.mxu0 0.0
  %635 = vmatpush.msra.mxu0 0.0
  %636 = vmatpush.msra.mxu0 0.0
  %637 = vmatpush.msra.mxu0 %v620
  %638 = vmatmul.f32.gmra.mxu0 %v462
  %v639 = vpop.f32.mrf.mxu0
  %v640 = vadd.f32 0.0, %v639
  %641 = vdwg.mxu0
  %v643 = vsel %vm84, %v616, 0
  %645 = vmatpush.msra.mxu0 0.0
  %646 = vmatpush.msra.mxu0 0.0
  %647 = vmatpush.msra.mxu0 0.0
  %648 = vmatpush.msra.mxu0 0.0
  %649 = vmatpush.msra.mxu0 0.0
  %650 = vmatpush.msra.mxu0 0.0
  %651 = vmatpush.msra.mxu0 0.0
  %652 = vmatpush.msra.mxu0 0.0
  %653 = vmatpush.msra.mxu0 0.0
  %654 = vmatpush.msra.mxu0 0.0
  %655 = vmatpush.msra.mxu0 0.0
  %656 = vmatpush.msra.mxu0 0.0
  %657 = vmatpush.msra.mxu0 0.0
  %658 = vmatpush.msra.mxu0 0.0
  %659 = vmatpush.msra.mxu0 0.0
  %660 = vmatpush.msra.mxu0 %v643
  %661 = vmatmul.f32.gmra.mxu0 %v488
  %v662 = vpop.f32.mrf.mxu0
  %v663 = vadd.f32 %v640, %v662
  %664 = vdwg.mxu0
  %v665 = vmul.f32 %v614, %v663
  %v666 = vld [vmem:[%s5] sm:$0xff]
  %v667 = vld [vmem:[%s5 + $0x8] sm:$0xff]
  %vm668 = vcmask 130048
  %v670 = vsel %vm668, %v665, 0
  %672 = vmatpush.msra.mxu0 0.0
  %673 = vmatpush.msra.mxu0 0.0
  %674 = vmatpush.msra.mxu0 0.0
  %675 = vmatpush.msra.mxu0 0.0
  %676 = vmatpush.msra.mxu0 0.0
  %677 = vmatpush.msra.mxu0 0.0
  %678 = vmatpush.msra.mxu0 0.0
  %679 = vmatpush.msra.mxu0 0.0
  %680 = vmatpush.msra.mxu0 0.0
  %681 = vmatpush.msra.mxu0 0.0
  %682 = vmatpush.msra.mxu0 0.0
  %683 = vmatpush.msra.mxu0 0.0
  %684 = vmatpush.msra.mxu0 0.0
  %685 = vmatpush.msra.mxu0 0.0
  %686 = vmatpush.msra.mxu0 %v667
  %687 = vmatpush.msra.mxu0 %v666
  %688 = vmatmul.f32.gmra.mxu0 %v670
  %v689 = vpop.f32.mrf.mxu0
  %v690 = vadd.f32 0.0, %v689
  %691 = vdwg.mxu0
  %v692 = vld [vmem:[%s6] sm:$0xff]
  %v693 = vld [vmem:[%s6 + $0x8] sm:$0xff]
  %694 = vmatpush.msra.mxu0 0.0
  %695 = vmatpush.msra.mxu0 0.0
  %696 = vmatpush.msra.mxu0 0.0
  %697 = vmatpush.msra.mxu0 0.0
  %698 = vmatpush.msra.mxu0 0.0
  %699 = vmatpush.msra.mxu0 0.0
  %700 = vmatpush.msra.mxu0 0.0
  %701 = vmatpush.msra.mxu0 0.0
  %702 = vmatpush.msra.mxu0 0.0
  %703 = vmatpush.msra.mxu0 0.0
  %704 = vmatpush.msra.mxu0 0.0
  %705 = vmatpush.msra.mxu0 0.0
  %706 = vmatpush.msra.mxu0 0.0
  %707 = vmatpush.msra.mxu0 0.0
  %708 = vmatpush.msra.mxu0 %v693
  %709 = vmatpush.msra.mxu0 %v692
  %710 = vmatmul.f32.gmra.mxu0 %v670
  %v711 = vpop.f32.mrf.mxu0
  %v712 = vadd.f32 0.0, %v711
  %713 = vdwg.mxu0
  %v714 = vmul.f32 %v690, %v712
  %v715 = vld [vmem:[%s7] sm:$0xff]
  %v716 = vld [vmem:[%s7 + $0x8] sm:$0xff]
  %v717 = vld [vmem:[%s7 + $0x10] sm:$0xff]
  %v718 = vld [vmem:[%s7 + $0x18] sm:$0xff]
  %v719 = vld [vmem:[%s7 + $0x20] sm:$0xff]
  %v720 = vld [vmem:[%s7 + $0x28] sm:$0xff]
  %v721 = vld [vmem:[%s8] sm:$0x1]
  %v723 = vperm.slane %v721, 0
  %vm725 = vcmask 392192
  %v727 = vsel %vm725, %v714, 0
  %729 = vmatpush.msra.mxu0 0.0
  %730 = vmatpush.msra.mxu0 0.0
  %731 = vmatpush.msra.mxu0 0.0
  %732 = vmatpush.msra.mxu0 0.0
  %733 = vmatpush.msra.mxu0 0.0
  %734 = vmatpush.msra.mxu0 0.0
  %735 = vmatpush.msra.mxu0 0.0
  %736 = vmatpush.msra.mxu0 0.0
  %737 = vmatpush.msra.mxu0 0.0
  %738 = vmatpush.msra.mxu0 0.0
  %739 = vmatpush.msra.mxu0 %v720
  %740 = vmatpush.msra.mxu0 %v719
  %741 = vmatpush.msra.mxu0 %v718
  %742 = vmatpush.msra.mxu0 %v717
  %743 = vmatpush.msra.mxu0 %v716
  %744 = vmatpush.msra.mxu0 %v715
  %745 = vmatmul.f32.gmra.mxu0 %v727
  %v746 = vpop.f32.mrf.mxu0
  %v747 = vadd.f32 %v723, %v746
  %748 = vdwg.mxu0
  %vm749 = vcmask 23552
  %v750 = vsel %vm749, %v747, -inf
  %751 = vmax.xlane.f32.xlu0 %v750
  %v752 = vpop.xlane.xlu0 %751
  %v753 = vsub.f32 %v747, %v752
  %v754 = vmul.f32 %v753, 1.442695
  %v755 = vpow.pop %v754
  %v756 = vsel %vm749, %v755, 0.0
  %757 = vadd.xlane.f32.xlu0 %v756
  %v758 = vpop.xlane.xlu0 %757
  %v759 = vlog2.pop %v758
  %v760 = vmul.f32 %v759, 0.6931472
  %v761 = vadd.f32 %v752, %v760
  %v762 = vsub.f32 %v747, %v761
  %763 = vst.msk [vmem:[%s9] sm:$0xff] %vm749, %v762
  // Predicated region
  $region38: #{hybrid_forward.1} parent=0 // pred_check
    _
  $region39: #{hybrid_forward.1} parent=0 // pred_check_branch
    %765 = sbr.rel (0) target = $region41
  $region40: #{hybrid_forward.1} parent=0 // pred_region
    _
  $region41: #{hybrid_forward.1} parent=0 // pred_fallthru
    _
  // Predicated region
  $region42: #{hybrid_forward.1} parent=0 // pred_check
    _
  $region43: #{hybrid_forward.1} parent=0 // pred_check_branch
    %767 = sbr.rel (0) target = $region45
  $region44: #{hybrid_forward.1} parent=0 // pred_region
    _
  $region45: #{hybrid_forward.1} parent=0 // pred_fallthru
    _

</llo_original>
